<compile_context>
chip_gen: v7x
topology: tpu7x:2x2x1
jax: 0.10.0
libtpu: 0.0.40
codegen_flags: <defaults>
</compile_context>

<pallas_src>
import jax
import jax.numpy as jnp
import numpy as np
from jax.experimental import pallas as pl
from jax.experimental.pallas import tpu as pltpu

F_LOGICAL = 1000                      # GPUNet-0 classifier output dim
HEAD_DIMS = (1, 1, 3, 3, 3)           # head1..head5 output dims
TOTAL_HEAD_OUT = sum(HEAD_DIMS)       # 11
OUT_PAD = 128                         # lane-dense padded fused head output
LANE = 128                            # vreg lane width
SUB = 8                               # vreg sublane width


def _multihead_kernel(x_ref, wc_ref, bc_ref, out_ref, acc_sc):
    """Streaming GAP -> single folded linear (surrogate backbone + 5 heads).

    x_ref:   [TB, C, T]    f32  one spatial chunk of one batch block
    wc_ref:  [C, 128]      f32  folded weight (w_proj @ w_heads) / HW, zero-padded
    bc_ref:  [1, 128]      f32  folded bias (b_proj @ w_heads + b_heads), zero-padded
    out_ref: [TB, 128]     f32
    acc_sc:  [TB, C, 128]  f32  lane-preserving spatial-sum accumulator
    """
    k = pl.program_id(1)
    nk = pl.num_programs(1)

    @pl.when(k == 0)
    def _():
        acc_sc[...] = jnp.zeros_like(acc_sc)

    tb, _, t = x_ref.shape
    n_chunks = t // LANE
    # Lane-preserving accumulation: steady state is pure vld + vadd (no per-step
    # XLU cross-lane reduce).  Batch rows are processed in groups of 8 so the
    # running partial is only a few vregs regardless of batch_tile (no spills),
    # and the accumulator is read-modified-written once per step per group.
    for r in range(0, tb, SUB):
        part = x_ref[r:r + SUB, :, 0:LANE]
        for j in range(1, n_chunks):
            part = part + x_ref[r:r + SUB, :, j * LANE:(j + 1) * LANE]
        acc_sc[r:r + SUB, :, :] += part

    @pl.when(k == nk - 1)
    def _():
        # One cross-lane reduce per batch block, then one tiny f32 MXU matmul.
        sums = jnp.sum(acc_sc[...], axis=-1)                       # [TB, C]
        out = jnp.dot(sums, wc_ref[...],
                      preferred_element_type=jnp.float32) + bc_ref[...]
        out_ref[...] = out.astype(out_ref.dtype)


def _round_up(x, m):
    return ((x + m - 1) // m) * m


def _vmem_budget_bytes():
    """Per-buffer x-block budget (VMEM bytes, incl. sublane padding)."""
    try:
        kind = jax.devices()[0].device_kind.lower()
    except Exception:
        kind = ""
    if "v5 lite" in kind or "v5e" in kind:
        return 4 * 1024 * 1024        # ~0.8 TB/s HBM: 4 MiB already amortizes overhead
    return 8 * 1024 * 1024            # v6e / v7x / default: larger chunks


def _pick_spatial_tile(hw_pad, C, budget_bytes):
    c_rows = _round_up(C, SUB)
    cap = (budget_bytes // 4) // (c_rows * SUB)      # so even an 8-row block fits
    cap = max(LANE, min(hw_pad, cap, 4096))
    t = cap - cap % LANE
    while hw_pad % t != 0:
        t -= LANE
    return t


def _pick_batch_tile(B, C, spatial_tile, budget_bytes):
    c_rows = _round_up(C, SUB)                       # honest sublane-padded VMEM rows
    bt = (budget_bytes // 4) // (c_rows * spatial_tile)
    bt = max(SUB, (bt // SUB) * SUB)                 # multiple of 8
    bt = min(bt, 128)                                # bound in-kernel unroll size
    if B >= 16:                                      # >=2 batch blocks (v7x megacore)
        bt = min(bt, _round_up((B + 1) // 2, SUB))
    bt = min(bt, _round_up(B, SUB))                  # don't exceed the (padded) batch
    return bt


def multihead_gpunet_forward(x_nchw, params, *, batch_tile=None, spatial_tile=None):
    """x_nchw: [B, C, H, W] float32 (NCHW, like the PyTorch module)."""
    B, C, H, W = x_nchw.shape
    HW = H * W
    x_flat = x_nchw.reshape(B, C, HW).astype(jnp.float32)

    # --- fold surrogate projection + all 5 heads + GAP scale into ONE linear ---
    #   out = mean_hw(x) @ w_proj @ w_heads + (b_proj @ w_heads + b_heads)
    #       = sum_hw(x) @ [(1/HW) * (w_proj @ w_heads)] + b_c            (all f32)
    wc = (params["w_proj"] @ params["w_heads"]) * (1.0 / HW)            # [C, 11]
    bc = params["b_proj"] @ params["w_heads"] + params["b_heads"]       # [1, 11]
    wc = jnp.pad(wc, ((0, 0), (0, OUT_PAD - wc.shape[1]))).astype(jnp.float32)
    bc = jnp.pad(bc, ((0, 0), (0, OUT_PAD - bc.shape[1]))).astype(jnp.float32)

    budget_bytes = _vmem_budget_bytes()

    # --- spatial (reduction) tiling: pad HW to a 128 multiple (zeros are benign
    #     for the sum; the 1/HW scale uses the true HW). ---
    HW_pad = _round_up(HW, LANE)
    if HW_pad != HW:
        x_flat = jnp.pad(x_flat, ((0, 0), (0, 0), (0, HW_pad - HW)))
    if spatial_tile is None:
        spatial_tile = _pick_spatial_tile(HW_pad, C, budget_bytes)
    assert spatial_tile % LANE == 0 and HW_pad % spatial_tile == 0
    n_hw_blocks = HW_pad // spatial_tile

    # --- batch tiling: multiple of 8 so out / acc blocks stay (8,128)-dense. ---
    if batch_tile is None:
        batch_tile = _pick_batch_tile(B, C, spatial_tile, budget_bytes)
    batch_tile = _round_up(batch_tile, SUB)
    B_pad = _round_up(B, batch_tile)
    if B_pad != B:
        x_flat = jnp.pad(x_flat, ((0, B_pad - B), (0, 0), (0, 0)))
    n_b_blocks = B_pad // batch_tile

    out_padded = pl.pallas_call(
        _multihead_kernel,
        out_shape=jax.ShapeDtypeStruct((B_pad, OUT_PAD), jnp.float32),
        grid_spec=pltpu.PrefetchScalarGridSpec(
            num_scalar_prefetch=0,
            grid=(n_b_blocks, n_hw_blocks),
            in_specs=[
                pl.BlockSpec((batch_tile, C, spatial_tile), lambda i, k: (i, 0, k)),
                pl.BlockSpec((C, OUT_PAD), lambda i, k: (0, 0)),
                pl.BlockSpec((1, OUT_PAD), lambda i, k: (0, 0)),
            ],
            out_specs=pl.BlockSpec((batch_tile, OUT_PAD), lambda i, k: (i, 0)),
            scratch_shapes=[pltpu.VMEM((batch_tile, C, LANE), jnp.float32)],
        ),
        compiler_params=pltpu.CompilerParams(
            dimension_semantics=("parallel", "arbitrary"),
            vmem_limit_bytes=48 * 1024 * 1024,
        ),
    )(x_flat, wc, bc)

    out = out_padded[:B, :TOTAL_HEAD_OUT]                                # [B, 11]
    outs, off = [], 0
    for d in HEAD_DIMS:
        outs.append(out[:, off:off + d])
        off += d
    return tuple(outs)


def init_params(key, in_channels):
    """Deterministic synthetic parameters (no checkpoint loading), logical shapes."""
    k_proj_w, k_proj_b, k_heads_w, k_heads_b = jax.random.split(key, 4)

    # Surrogate backbone projection C -> 1000.
    w_proj = 0.02 * jax.random.normal(
        k_proj_w, (in_channels, F_LOGICAL), dtype=jnp.float32)
    b_proj = 0.02 * jax.random.normal(
        k_proj_b, (1, F_LOGICAL), dtype=jnp.float32)

    # Five nn.Linear(1000, d) heads concatenated along the output axis,
    # stored as [in, out] = W^T so the forward computes x @ W^T + b (F.linear).
    head_w_keys = jax.random.split(k_heads_w, len(HEAD_DIMS))
    head_b_keys = jax.random.split(k_heads_b, len(HEAD_DIMS))
    w_heads = jnp.concatenate(
        [0.02 * jax.random.normal(hk, (F_LOGICAL, d), dtype=jnp.float32)
         for hk, d in zip(head_w_keys, HEAD_DIMS)], axis=1)          # [1000, 11]
    b_heads = jnp.concatenate(
        [0.02 * jax.random.normal(bk, (1, d), dtype=jnp.float32)
         for bk, d in zip(head_b_keys, HEAD_DIMS)], axis=1)          # [1, 11]

    return {"w_proj": w_proj, "b_proj": b_proj,
            "w_heads": w_heads, "b_heads": b_heads}


def _reference(x, params):
    B, C, H, W = x.shape
    pooled = x.reshape(B, C, H * W).mean(axis=-1)
    feats = pooled @ params["w_proj"] + params["b_proj"]
    return feats @ params["w_heads"] + params["b_heads"]            # [B, 11]


if __name__ == "__main__":
    key = jax.random.PRNGKey(0)

    # --- test 1: module-like small shapes; multi-step spatial reduction -----
    k_x, k_p, key = jax.random.split(key, 3)
    B, C, H, W = 2, 4, 16, 16
    x = jax.random.normal(k_x, (B, C, H, W), dtype=jnp.float32)
    params = init_params(k_p, in_channels=C)

    outs = multihead_gpunet_forward(x, params, spatial_tile=128)
    outs = jax.block_until_ready(outs)

    expected_shapes = [(B, 1), (B, 1), (B, 3), (B, 3), (B, 3)]
    assert [tuple(o.shape) for o in outs] == expected_shapes, \
        [tuple(o.shape) for o in outs]
    assert all(o.dtype == jnp.float32 for o in outs)
    np.testing.assert_allclose(np.asarray(jnp.concatenate(outs, axis=1)),
                               np.asarray(_reference(x, params)),
                               rtol=1e-3, atol=1e-5)

    # --- test 2: multiple batch blocks, C=3, multi-chunk lane accumulation ---
    k_x2, k_p2, key = jax.random.split(key, 3)
    B2, C2, H2, W2 = 20, 3, 32, 32
    x2 = jax.random.normal(k_x2, (B2, C2, H2, W2), dtype=jnp.float32)
    params2 = init_params(k_p2, in_channels=C2)

    outs2 = multihead_gpunet_forward(x2, params2, spatial_tile=512)
    outs2 = jax.block_until_ready(outs2)
    expected_shapes2 = [(B2, 1), (B2, 1), (B2, 3), (B2, 3), (B2, 3)]
    assert [tuple(o.shape) for o in outs2] == expected_shapes2, \
        [tuple(o.shape) for o in outs2]
    np.testing.assert_allclose(np.asarray(jnp.concatenate(outs2, axis=1)),
                               np.asarray(_reference(x2, params2)),
                               rtol=1e-3, atol=1e-5)

    print("KERNEL_OK")
</pallas_src>

<mosaic_0001>
module attributes {stable_mosaic.version = 11 : i64} {
  func.func @_multihead_kernel(%arg0: i32, %arg1: i32, %arg2: memref<8x4x128xf32, #tpu.memory_space<vmem>>, %arg3: memref<4x128xf32, #tpu.memory_space<vmem>>, %arg4: memref<1x128xf32, #tpu.memory_space<vmem>>, %arg5: memref<8x128xf32, #tpu.memory_space<vmem>>, %arg6: memref<8x4x128xf32, #tpu.memory_space<vmem>>) attributes {dimension_semantics = [#tpu.dimension_semantics<parallel>, #tpu.dimension_semantics<arbitrary>], iteration_bounds = array<i64: 1, 2>, scalar_prefetch = 0 : i64, scratch_operands = 1 : i64, tpu.core_type = #tpu.core_type<tc>, window_params = [{transform_indices = @transform_0, window_bounds = array<i64: 8, 4, 128>}, {pipeline_mode = #tpu.pipeline_mode<synchronous>, transform_indices = @transform_1, window_bounds = array<i64: 4, 128>}, {pipeline_mode = #tpu.pipeline_mode<synchronous>, transform_indices = @transform_2, window_bounds = array<i64: 1, 128>}, {transform_indices = @transform_3, window_bounds = array<i64: 8, 128>}]} {
    %c0_i32 = arith.constant 0 : i32
    %0 = arith.cmpi eq, %arg1, %c0_i32 : i32
    %1 = arith.extui %0 : i1 to i32
    %c0_i32_0 = arith.constant 0 : i32
    %2 = arith.cmpi ne, %1, %c0_i32_0 : i32
    scf.if %2 {
      %cst = arith.constant 0.000000e+00 : f32
      %10 = vector.broadcast %cst : f32 to vector<8x4x128xf32>
      %c0_10 = arith.constant 0 : index
      %c0_11 = arith.constant 0 : index
      %c0_12 = arith.constant 0 : index
      %11 = vector.load %arg6[%c0_10, %c0_11, %c0_12] : memref<8x4x128xf32, #tpu.memory_space<vmem>>, vector<8x4x128xf32>
      tpu.vector_store %arg6[%c0_10, %c0_11, %c0_12], %10 {strides = array<i32>} : memref<8x4x128xf32, #tpu.memory_space<vmem>>, vector<8x4x128xf32>,
    } else {
    }
    %c0 = arith.constant 0 : index
    %c0_1 = arith.constant 0 : index
    %c0_2 = arith.constant 0 : index
    %3 = vector.load %arg2[%c0, %c0_1, %c0_2] : memref<8x4x128xf32, #tpu.memory_space<vmem>>, vector<8x4x128xf32>
    %c0_3 = arith.constant 0 : index
    %c0_4 = arith.constant 0 : index
    %c0_5 = arith.constant 0 : index
    %4 = vector.load %arg6[%c0_3, %c0_4, %c0_5] : memref<8x4x128xf32, #tpu.memory_space<vmem>>, vector<8x4x128xf32>
    %5 = arith.addf %4, %3 : vector<8x4x128xf32>
    %c0_6 = arith.constant 0 : index
    %c0_7 = arith.constant 0 : index
    %c0_8 = arith.constant 0 : index
    %6 = vector.load %arg6[%c0_6, %c0_7, %c0_8] : memref<8x4x128xf32, #tpu.memory_space<vmem>>, vector<8x4x128xf32>
    tpu.vector_store %arg6[%c0_6, %c0_7, %c0_8], %5 {strides = array<i32>} : memref<8x4x128xf32, #tpu.memory_space<vmem>>, vector<8x4x128xf32>,
    %c1_i32 = arith.constant 1 : i32
    %7 = arith.cmpi eq, %arg1, %c1_i32 : i32
    %8 = arith.extui %7 : i1 to i32
    %c0_i32_9 = arith.constant 0 : i32
    %9 = arith.cmpi ne, %8, %c0_i32_9 : i32
    scf.if %9 {
      %c0_10 = arith.constant 0 : index
      %c0_11 = arith.constant 0 : index
      %c0_12 = arith.constant 0 : index
      %10 = vector.load %arg6[%c0_10, %c0_11, %c0_12] : memref<8x4x128xf32, #tpu.memory_space<vmem>>, vector<8x4x128xf32>
      %cst = arith.constant dense<0.000000e+00> : vector<8x4xf32>
      %11 = vector.multi_reduction <add>, %10, %cst [2] : vector<8x4x128xf32> to vector<8x4xf32>
      %c0_13 = arith.constant 0 : index
      %c0_14 = arith.constant 0 : index
      %12 = vector.load %arg3[%c0_13, %c0_14] : memref<4x128xf32, #tpu.memory_space<vmem>>, vector<4x128xf32>
      %cst_15 = arith.constant dense<0.000000e+00> : vector<8x128xf32>
      %13 = tpu.matmul %11, %12, %cst_15 {dimension_numbers = #tpu.dot_dimension_numbers<[1], [0], [0], [1], [0, 0, 1, 1], [], []>} : vector<8x4xf32>, vector<4x128xf32>, vector<8x128xf32> -> vector<8x128xf32>
      %c0_16 = arith.constant 0 : index
      %c0_17 = arith.constant 0 : index
      %14 = vector.load %arg4[%c0_16, %c0_17] : memref<1x128xf32, #tpu.memory_space<vmem>>, vector<1x128xf32>
      %15 = vector.broadcast %14 : vector<1x128xf32> to vector<8x128xf32>
      %16 = arith.addf %13, %15 : vector<8x128xf32>
      %c0_18 = arith.constant 0 : index
      %c0_19 = arith.constant 0 : index
      %17 = vector.load %arg5[%c0_18, %c0_19] : memref<8x128xf32, #tpu.memory_space<vmem>>, vector<8x128xf32>
      tpu.vector_store %arg5[%c0_18, %c0_19], %16 {strides = array<i32>} : memref<8x128xf32, #tpu.memory_space<vmem>>, vector<8x128xf32>,
    } else {
    }
    return
  }
  func.func @transform_0(%arg0: i32, %arg1: i32) -> (i32, i32, i32) {
    %c0_i32 = arith.constant 0 : i32
    %c0_i32_0 = arith.constant 0 : i32
    return %arg0, %c0_i32, %arg1 : i32, i32, i32
  }
  func.func @transform_1(%arg0: i32, %arg1: i32) -> (i32, i32) {
    %c0_i32 = arith.constant 0 : i32
    %c0_i32_0 = arith.constant 0 : i32
    %c0_i32_1 = arith.constant 0 : i32
    return %c0_i32, %c0_i32_0 : i32, i32
  }
  func.func @transform_2(%arg0: i32, %arg1: i32) -> (i32, i32) {
    %c0_i32 = arith.constant 0 : i32
    %c0_i32_0 = arith.constant 0 : i32
    %c0_i32_1 = arith.constant 0 : i32
    return %c0_i32, %c0_i32_0 : i32, i32
  }
  func.func @transform_3(%arg0: i32, %arg1: i32) -> (i32, i32) {
    %c0_i32 = arith.constant 0 : i32
    %c0_i32_0 = arith.constant 0 : i32
    return %arg0, %c0_i32 : i32, i32
  }
}

</mosaic_0001>

<llo_original>
// kernel: tpu_custom_call.1
$region0: #{tpu_custom_call.1}
  #allocation0 [shape = 'u32[]', space=smem, size = 0x4, offset = 0x4, fixed_abs, tag = 'smem constant byte address 0x4 - core index']
  #allocation1 [shape = 'u32[144,128]{1,0:T(1,128)}', space=vmem, size = 0x12000, scoped, tag = 'internal scratch']
  #allocation2 [shape = 'f32[8,4,128]{2,1,0:T(4,128)}', space=vmem, size = 0x4000, scoped, tag = 'scratch operand']
  %s0 = inlined_call_operand.hbm [shape: f32[8,4,256], index: 0, kind: input, shape index: {}]
  %s1 = inlined_call_operand.hbm [shape: f32[4,128], index: 1, kind: input, shape index: {}]
  %s2 = inlined_call_operand.vmem [shape: f32[1,128], index: 2, kind: input, shape index: {}]
  %s3 = inlined_call_operand.hbm [shape: f32[8,128], index: 3, kind: output, shape index: {}]
  %s4 = sld [smem:[#allocation0]]
  $region61: #{tpu_custom_call.1} parent=0
    _
  %s6 = ssub.s32 1, %s4
  %s7 = scalar_select 0, %s6, %s4
  $region1: #{tpu_custom_call.1} parent=0
    #allocation3 [shape = 'u8[32768]{0}', space=vmem, size = 0x8000, scoped, tag = 'input window, operand 0']
    #allocation4 [shape = 's32[2]{0}', space=sflag, size = 0x8, scoped, tag = 'scoped memory for tpu_custom_call.1']
    #allocation5 [shape = 's32[2]{0}', space=sflag, size = 0x8, scoped, tag = 'scoped memory for tpu_custom_call.1']
    #allocation6 [shape = 'u8[2048]{0}', space=vmem, size = 0x800, scoped, tag = 'input window, operand 1, single buffered']
    #allocation7 [shape = 's32[1]{0}', space=sflag, size = 0x4, scoped, tag = 'scoped memory for tpu_custom_call.1']
    #allocation8 [shape = 'u8[4096]{0}', space=vmem, size = 0x1000, scoped, tag = 'output window, operand 0, single buffered']
    %8 = vsyncpa [#allocation4], 0
    %s9 = scalar_lea.sflag [#allocation4], 1
    %10 = vsyncpa %s9, 0
    %11 = vsyncpa [#allocation7], 0
    %12 = vsyncpa [#allocation5], 0
    loop: start=0, step=1, limit=4
    $region2: #{tpu_custom_call.1} parent=1 // loop_pre_header
      _
    $region3: #{tpu_custom_call.1} parent=1 // loop_header
      %s14 = sphi 0, %s18
      %p15 = scmp.ge.s32.totalorder %s14, 4
      %s21 = sphi 0, %s33
      %s22 = sphi 0, %s29
      %s23 = sphi 0, %s21
      %s24 = sphi 0, %s22
      %s25 = sphi 0, %s23
      %s26 = sphi 0, %s24
      %s38 = sphi 0, %s40
      %s41 = sphi 0, %s38
      %s42 = sphi 0, %s41
      %s58 = sphi 0, %s42
      %s62 = sphi 0, %s62
      %s64 = sphi 0, %s62
      %s65 = sphi 0, %s64
      %s79 = sphi 0, %s65
      %s83 = sphi 0, %s83
      %s85 = sphi 0, %s83
      %s86 = sphi 0, %s85
      %s100 = sphi 0, %s86
      %s106 = sphi 0, %s108
      %s109 = sphi 0, %s106
      %s110 = sphi 0, %s109
      %s126 = sphi 0, %s110
    $region4: #{tpu_custom_call.1} parent=1 // loop_header_branch
      %17 = sbr.rel (%p15) target = $region8
    $region5: #{tpu_custom_call.1} parent=1 // loop_body
      %s19 = ssub.s32 %s14, 1
      %s20 = ssub.s32 %s14, 2
      %s27 = sadd.s32 1, %s22
      %p28 = scmp.ge.s32.totalorder %s27, 2
      %s29 = scalar_select %p28, 0, %s27
      %s30 = sadd.s32 1, %s21
      %s31 = scalar_select %p28, %s30, %s21
      %p32 = scmp.ge.s32.totalorder %s31, 1
      %s33 = scalar_select %p32, 0, %s31
      %s34 = ssub.s32 %s21, %s33
      %s35 = ssub.s32 %s22, %s29
      %s36 = sor.u32 %s34, %s35
      %p37 = scmp.eq.s32.totalorder %s36, 0
      %s39 = sadd.s32 %s38, 1
      %s40 = scalar_select %p37, %s38, %s39
      %p43 = pneg %p37
      %p44 = scmp.eq.s32.totalorder %s14, 1
      %p45 = por %p43, %p44
      %p46 = scmp.ne.s32.totalorder %s38, %s41
      %p47 = scmp.eq.s32.totalorder %s14, 0
      %p48 = por %p46, %p47
      %p49 = scmp.ne.s32.totalorder %s38, %s41
      %p50 = scmp.eq.s32.totalorder %s19, 1
      %p51 = por %p49, %p50
      %p52 = scmp.ne.s32.totalorder %s41, %s42
      %p53 = scmp.eq.s32.totalorder %s19, 0
      %p54 = por %p52, %p53
      %p55 = scmp.ne.s32.totalorder %s41, %s42
      %p56 = scmp.eq.s32.totalorder %s20, 1
      %p57 = por %p55, %p56
      %p59 = scmp.ne.s32.totalorder %s42, %s58
      %p60 = scmp.eq.s32.totalorder %s20, 0
      %p61 = por %p59, %p60
      %s63 = sadd.s32 %s62, 1
      %p66 = scmp.eq.s32.totalorder %s14, 1
      %p67 = scmp.ne.s32.totalorder %s62, %s64
      %p68 = scmp.eq.s32.totalorder %s14, 0
      %p69 = por %p67, %p68
      %p70 = scmp.ne.s32.totalorder %s62, %s64
      %p71 = scmp.eq.s32.totalorder %s19, 1
      %p72 = por %p70, %p71
      %p73 = scmp.ne.s32.totalorder %s64, %s65
      %p74 = scmp.eq.s32.totalorder %s19, 0
      %p75 = por %p73, %p74
      %p76 = scmp.ne.s32.totalorder %s64, %s65
      %p77 = scmp.eq.s32.totalorder %s20, 1
      %p78 = por %p76, %p77
      %p80 = scmp.ne.s32.totalorder %s65, %s79
      %p81 = scmp.eq.s32.totalorder %s20, 0
      %p82 = por %p80, %p81
      %s84 = sadd.s32 %s83, 1
      %p87 = scmp.eq.s32.totalorder %s14, 1
      %p88 = scmp.ne.s32.totalorder %s83, %s85
      %p89 = scmp.eq.s32.totalorder %s14, 0
      %p90 = por %p88, %p89
      %p91 = scmp.ne.s32.totalorder %s83, %s85
      %p92 = scmp.eq.s32.totalorder %s19, 1
      %p93 = por %p91, %p92
      %p94 = scmp.ne.s32.totalorder %s85, %s86
      %p95 = scmp.eq.s32.totalorder %s19, 0
      %p96 = por %p94, %p95
      %p97 = scmp.ne.s32.totalorder %s85, %s86
      %p98 = scmp.eq.s32.totalorder %s20, 1
      %p99 = por %p97, %p98
      %p101 = scmp.ne.s32.totalorder %s86, %s100
      %p102 = scmp.eq.s32.totalorder %s20, 0
      %p103 = por %p101, %p102
      %s104 = ssub.s32 %s21, %s33
      %p105 = scmp.eq.s32.totalorder %s104, 0
      %s107 = sadd.s32 %s106, 1
      %s108 = scalar_select %p105, %s106, %s107
      %p111 = pneg %p105
      %p112 = scmp.eq.s32.totalorder %s14, 1
      %p113 = por %p111, %p112
      %p114 = scmp.ne.s32.totalorder %s106, %s109
      %p115 = scmp.eq.s32.totalorder %s14, 0
      %p116 = por %p114, %p115
      %p117 = scmp.ne.s32.totalorder %s106, %s109
      %p118 = scmp.eq.s32.totalorder %s19, 1
      %p119 = por %p117, %p118
      %p120 = scmp.ne.s32.totalorder %s109, %s110
      %p121 = scmp.eq.s32.totalorder %s19, 0
      %p122 = por %p120, %p121
      %p123 = scmp.ne.s32.totalorder %s109, %s110
      %p124 = scmp.eq.s32.totalorder %s20, 1
      %p125 = por %p123, %p124
      %p127 = scmp.ne.s32.totalorder %s110, %s126
      %p128 = scmp.eq.s32.totalorder %s20, 0
      %p129 = por %p127, %p128
      %p130 = scmp.le.s32.totalorder 1, %s14
      %p131 = scmp.lt.s32.totalorder %s14, 3
      %p132 = pnand %p130, %p131
      %p133 = pneg %p132
      // Predicated region
      $region9: #{tpu_custom_call.1} parent=5 // pred_check
        _
      $region10: #{tpu_custom_call.1} parent=5 // pred_check_branch
        %135 = sbr.rel (%p132) target = $region12
      $region11: #{tpu_custom_call.1} parent=5 // pred_region
        %s136 = ssub.s32 %s14, 1
        // Predicated region
        $region13: #{tpu_custom_call.1} parent=11 // pred_check
          %p137 = pneg %p75
        $region14: #{tpu_custom_call.1} parent=11 // pred_check_branch
          %139 = sbr.rel (%p137) target = $region16
        $region15: #{tpu_custom_call.1} parent=11 // pred_region
          %s141 = ssub.s32 64, 64
          %142 = vsyncadd [#allocation7], %s141
          %s144 = sshll.u32 [#allocation6], 4
          %s145 = int_to_ptr.vmem [resolvable:$true] %s144
          %147 = dma.hbm_to_vmem [thread:$0]  %s1, 64, %s145, [#allocation7]
        $region16: #{tpu_custom_call.1} parent=11 // pred_fallthru
          _
        // Predicated region
        $region17: #{tpu_custom_call.1} parent=11 // pred_check
          %p148 = pneg %p96
        $region18: #{tpu_custom_call.1} parent=11 // pred_check_branch
          %150 = sbr.rel (%p148) target = $region20
        $region19: #{tpu_custom_call.1} parent=11 // pred_region
          _
        $region20: #{tpu_custom_call.1} parent=11 // pred_fallthru
          _
      $region12: #{tpu_custom_call.1} parent=5 // pred_fallthru
        _
      %p151 = scmp.lt.s32.totalorder %s14, 2
      // Predicated region
      $region21: #{tpu_custom_call.1} parent=5 // pred_check
        %p152 = pneg %p151
      $region22: #{tpu_custom_call.1} parent=5 // pred_check_branch
        %154 = sbr.rel (%p152) target = $region24
      $region23: #{tpu_custom_call.1} parent=5 // pred_region
        // Predicated region
        $region25: #{tpu_custom_call.1} parent=23 // pred_check
          %p155 = pneg %p48
        $region26: #{tpu_custom_call.1} parent=23 // pred_check_branch
          %157 = sbr.rel (%p155) target = $region28
        $region27: #{tpu_custom_call.1} parent=23 // pred_region
          %s158 = sand.u32 %s38, 1
          %s159 = scalar_lea.sflag [#allocation4], %s158
          %s160 = sand.u32 %s38, 1
          %s161 = smul.addr %s160, 32
          %s162 = scalar_lea.vmem [#allocation3], %s161
          %s163 = smul.u32 8, %s21
          %s165 = ssub.s32 512, 512
          %166 = vsyncadd %s159, %s165
          %s167 = smul.addr %s163, 2
          %s168 = sadd.s32 %s22, %s167
          %s169 = smul.addr %s168, 64
          %s170 = scalar_lea.hbm %s0, %s169
          %s171 = sshll.u32 %s162, 4
          %s172 = int_to_ptr.vmem [resolvable:$true] %s171
          %177 = dma.hbm_to_vmem [thread:$0]  %s170, 512, %s172, %s159, 128, 64, 4
        $region28: #{tpu_custom_call.1} parent=23 // pred_fallthru
          _
      $region24: #{tpu_custom_call.1} parent=5 // pred_fallthru
        _
      %p178 = scmp.le.s32.totalorder 1, %s14
      %p179 = scmp.lt.s32.totalorder %s14, 3
      %p180 = pnand %p178, %p179
      %p181 = pneg %p180
      // Predicated region
      $region29: #{tpu_custom_call.1} parent=5 // pred_check
        _
      $region30: #{tpu_custom_call.1} parent=5 // pred_check_branch
        %183 = sbr.rel (%p180) target = $region32
      $region31: #{tpu_custom_call.1} parent=5 // pred_region
        %s184 = ssub.s32 %s14, 1
        %s185 = sand.u32 %s41, 1
        %s186 = scalar_lea.sflag [#allocation4], %s185
        %s187 = sand.u32 %s41, 1
        %s188 = smul.addr %s187, 32
        %s189 = scalar_lea.vmem [#allocation3], %s188
        // Predicated region
        $region33: #{tpu_custom_call.1} parent=31 // pred_check
          %p190 = pneg %p54
        $region34: #{tpu_custom_call.1} parent=31 // pred_check_branch
          %192 = sbr.rel (%p190) target = $region36
        $region35: #{tpu_custom_call.1} parent=31 // pred_region
          %193 = dma.done %s186, 512
        $region36: #{tpu_custom_call.1} parent=31 // pred_fallthru
          _
        // Predicated region
        $region37: #{tpu_custom_call.1} parent=31 // pred_check
          %p194 = pneg %p75
        $region38: #{tpu_custom_call.1} parent=31 // pred_check_branch
          %196 = sbr.rel (%p194) target = $region40
        $region39: #{tpu_custom_call.1} parent=31 // pred_region
          %197 = dma.done [#allocation7], 64
        $region40: #{tpu_custom_call.1} parent=31 // pred_fallthru
          _
        %s198 = sand.u32 %s41, 1
        %s199 = scalar_lea.sflag [#allocation4], %s198
        %s200 = sand.u32 %s41, 1
        %s201 = smul.addr %s200, 32
        %s202 = scalar_lea.vmem [#allocation3], %s201
        %p203 = pneg %p54
        %p204 = pneg %p51
        %p205 = pneg %p75
        %p206 = pneg %p72
        %p207 = pneg %p96
        %p208 = pneg %p93
        %p209 = pneg %p122
        %p210 = pneg %p119
        %s211 = smul.u32 8, %s23
        %p212 = scmp.eq.s32.totalorder %s24, 0
        // Predicated region
        $region41: #{tpu_custom_call.1} parent=31 // pred_check
          %p213 = pneg %p212
        $region42: #{tpu_custom_call.1} parent=31 // pred_check_branch
          %215 = sbr.rel (%p213) target = $region44
        $region43: #{tpu_custom_call.1} parent=31 // pred_region
          %216 = vst [vmem:[#allocation2] sm:$0xf] 0.0
          %217 = vst [vmem:[#allocation2 + $0x4] sm:$0xf] 0.0
          %218 = vst [vmem:[#allocation2 + $0x8] sm:$0xf] 0.0
          %219 = vst [vmem:[#allocation2 + $0xc] sm:$0xf] 0.0
          %220 = vst [vmem:[#allocation2 + $0x10] sm:$0xf] 0.0
          %221 = vst [vmem:[#allocation2 + $0x14] sm:$0xf] 0.0
          %222 = vst [vmem:[#allocation2 + $0x18] sm:$0xf] 0.0
          %223 = vst [vmem:[#allocation2 + $0x1c] sm:$0xf] 0.0
        $region44: #{tpu_custom_call.1} parent=31 // pred_fallthru
          _
        %v224 = vld [vmem:[%s189] sm:$0xf]
        %v225 = vld [vmem:[%s189 + $0x4] sm:$0xf]
        %v226 = vld [vmem:[%s189 + $0x8] sm:$0xf]
        %v227 = vld [vmem:[%s189 + $0xc] sm:$0xf]
        %v228 = vld [vmem:[%s189 + $0x10] sm:$0xf]
        %v229 = vld [vmem:[%s189 + $0x14] sm:$0xf]
        %v230 = vld [vmem:[%s189 + $0x18] sm:$0xf]
        %v231 = vld [vmem:[%s189 + $0x1c] sm:$0xf]
        %v232 = vld [vmem:[#allocation2] sm:$0xf]
        %v233 = vld [vmem:[#allocation2 + $0x4] sm:$0xf]
        %v234 = vld [vmem:[#allocation2 + $0x8] sm:$0xf]
        %v235 = vld [vmem:[#allocation2 + $0xc] sm:$0xf]
        %v236 = vld [vmem:[#allocation2 + $0x10] sm:$0xf]
        %v237 = vld [vmem:[#allocation2 + $0x14] sm:$0xf]
        %v238 = vld [vmem:[#allocation2 + $0x18] sm:$0xf]
        %v239 = vld [vmem:[#allocation2 + $0x1c] sm:$0xf]
        %v240 = vadd.f32 %v232, %v224
        %v241 = vadd.f32 %v233, %v225
        %v242 = vadd.f32 %v234, %v226
        %v243 = vadd.f32 %v235, %v227
        %v244 = vadd.f32 %v236, %v228
        %v245 = vadd.f32 %v237, %v229
        %v246 = vadd.f32 %v238, %v230
        %v247 = vadd.f32 %v239, %v231
        %248 = vst [vmem:[#allocation2] sm:$0xf] %v240
        %249 = vst [vmem:[#allocation2 + $0x4] sm:$0xf] %v241
        %250 = vst [vmem:[#allocation2 + $0x8] sm:$0xf] %v242
        %251 = vst [vmem:[#allocation2 + $0xc] sm:$0xf] %v243
        %252 = vst [vmem:[#allocation2 + $0x10] sm:$0xf] %v244
        %253 = vst [vmem:[#allocation2 + $0x14] sm:$0xf] %v245
        %254 = vst [vmem:[#allocation2 + $0x18] sm:$0xf] %v246
        %255 = vst [vmem:[#allocation2 + $0x1c] sm:$0xf] %v247
        %p256 = scmp.eq.s32.totalorder %s24, 1
        // Predicated region
        $region45: #{tpu_custom_call.1} parent=31 // pred_check
          %p257 = pneg %p256
        $region46: #{tpu_custom_call.1} parent=31 // pred_check_branch
          %259 = sbr.rel (%p257) target = $region48
        $region47: #{tpu_custom_call.1} parent=31 // pred_region
          %v260 = vld [vmem:[#allocation2] sm:$0xf]
          %v261 = vld [vmem:[#allocation2 + $0x4] sm:$0xf]
          %v262 = vld [vmem:[#allocation2 + $0x8] sm:$0xf]
          %v263 = vld [vmem:[#allocation2 + $0xc] sm:$0xf]
          %v264 = vld [vmem:[#allocation2 + $0x10] sm:$0xf]
          %v265 = vld [vmem:[#allocation2 + $0x14] sm:$0xf]
          %v266 = vld [vmem:[#allocation2 + $0x18] sm:$0xf]
          %v267 = vld [vmem:[#allocation2 + $0x1c] sm:$0xf]
          %vm268 = vcmask 1043456
          %v269 = vsel %vm268, %v260, 0.0
          %270 = vadd.xlane.f32.xlu0 %v269
          %v271 = vpop.xlane.xlu0 %270
          %v272 = vsel %vm268, %v261, 0.0
          %273 = vadd.xlane.f32.xlu0 %v272
          %v274 = vpop.xlane.xlu0 %273
          %v275 = vsel %vm268, %v262, 0.0
          %276 = vadd.xlane.f32.xlu0 %v275
          %v277 = vpop.xlane.xlu0 %276
          %v278 = vsel %vm268, %v263, 0.0
          %279 = vadd.xlane.f32.xlu0 %v278
          %v280 = vpop.xlane.xlu0 %279
          %v281 = vsel %vm268, %v264, 0.0
          %282 = vadd.xlane.f32.xlu0 %v281
          %v283 = vpop.xlane.xlu0 %282
          %v284 = vsel %vm268, %v265, 0.0
          %285 = vadd.xlane.f32.xlu0 %v284
          %v286 = vpop.xlane.xlu0 %285
          %v287 = vsel %vm268, %v266, 0.0
          %288 = vadd.xlane.f32.xlu0 %v287
          %v289 = vpop.xlane.xlu0 %288
          %v290 = vsel %vm268, %v267, 0.0
          %291 = vadd.xlane.f32.xlu0 %v290
          %v292 = vpop.xlane.xlu0 %291
          %v293 = vld [vmem:[#allocation6] sm:$0xf]
          %v294 = vld [vmem:[%s2] sm:$0x1]
          %v296 = vlaneseq
          %v297 = vshrl.u32 %v296, 7
          %v298 = vsub.s32 0, %v297
          %v299 = vrot.slane %v294, %v298
          %v309 = vlaneseq
          %v310 = vand.u32 %v309, 127
          %v311 = vlaneseq
          %v312 = vshrl.u32 %v311, 7
          %v313 = vsub.s32 %v310, %v312
          %v314 = vrot.slane %v271, %v313
          %v315 = vlaneseq
          %v316 = vshrl.u32 %v315, 7
          %v317 = vsub.s32 %v310, %v316
          %v318 = vrot.slane %v274, %v317
          %v319 = vlaneseq
          %v320 = vshrl.u32 %v319, 7
          %v321 = vsub.s32 %v310, %v320
          %v322 = vrot.slane %v277, %v321
          %v323 = vlaneseq
          %v324 = vshrl.u32 %v323, 7
          %v325 = vsub.s32 %v310, %v324
          %v326 = vrot.slane %v280, %v325
          %v327 = vlaneseq
          %v328 = vshrl.u32 %v327, 7
          %v329 = vsub.s32 %v310, %v328
          %v330 = vrot.slane %v283, %v329
          %v331 = vlaneseq
          %v332 = vshrl.u32 %v331, 7
          %v333 = vsub.s32 %v310, %v332
          %v334 = vrot.slane %v286, %v333
          %v335 = vlaneseq
          %v336 = vshrl.u32 %v335, 7
          %v337 = vsub.s32 %v310, %v336
          %v338 = vrot.slane %v289, %v337
          %v339 = vlaneseq
          %v340 = vshrl.u32 %v339, 7
          %v341 = vsub.s32 %v310, %v340
          %v342 = vrot.slane %v292, %v341
          %vm343 = vcmask 1041409
          %v344 = vsel %vm343, %v318, %v314
          %vm345 = vcmask 1042434
          %v346 = vsel %vm345, %v322, %v344
          %vm347 = vcmask 1043459
          %v348 = vsel %vm347, %v326, %v346
          %vm349 = vcmask 1044484
          %v350 = vsel %vm349, %v330, %v348
          %vm351 = vcmask 1045509
          %v352 = vsel %vm351, %v334, %v350
          %vm353 = vcmask 1046534
          %v354 = vsel %vm353, %v338, %v352
          %vm355 = vcmask 1047559
          %v356 = vsel %vm355, %v342, %v354
          %vm357 = vcmask 31744
          %v358 = vsel %vm357, %v356, 0
          %v361 = vsel %vm268, %v293, 0
          %363 = vmatprep.subr.mxu0 0.0
          %364 = vmatpush1.msra.mxu0 %v361
          %365 = vmatprep.subr.mxu0 0.0
          %366 = vmatpush1.msra.mxu0 0.0
          %367 = vmatprep.subr.mxu0 0.0
          %368 = vmatpush1.msra.mxu0 0.0
          %369 = vmatprep.subr.mxu0 0.0
          %370 = vmatpush1.msra.mxu0 0.0
          %371 = vmatprep.subr.mxu0 0.0
          %372 = vmatpush1.msra.mxu0 0.0
          %373 = vmatprep.subr.mxu0 0.0
          %374 = vmatpush1.msra.mxu0 0.0
          %375 = vmatprep.subr.mxu0 0.0
          %376 = vmatpush1.msra.mxu0 0.0
          %377 = vmatprep.subr.mxu0 0.0
          %378 = vmatpush1.msra.mxu0 0.0
          %379 = vmatprep.subr.mxu0 0.0
          %380 = vmatpush1.msra.mxu0 0.0
          %381 = vmatprep.subr.mxu0 0.0
          %382 = vmatpush1.msra.mxu0 0.0
          %383 = vmatprep.subr.mxu0 0.0
          %384 = vmatpush1.msra.mxu0 0.0
          %385 = vmatprep.subr.mxu0 0.0
          %386 = vmatpush1.msra.mxu0 0.0
          %387 = vmatprep.subr.mxu0 0.0
          %388 = vmatpush1.msra.mxu0 0.0
          %389 = vmatprep.subr.mxu0 0.0
          %390 = vmatpush1.msra.mxu0 0.0
          %391 = vmatprep.subr.mxu0 0.0
          %392 = vmatpush1.msra.mxu0 0.0
          %393 = vmatprep.subr.mxu0 0.0
          %394 = vmatpush1.msra.mxu0 0.0
          %395 = vmatprep.subr.mxu0 0.0
          %396 = vmatpush1.msra.mxu0 0.0
          %397 = vmatprep.subr.mxu0 0.0
          %398 = vmatpush1.msra.mxu0 0.0
          %399 = vmatprep.subr.mxu0 0.0
          %400 = vmatpush1.msra.mxu0 0.0
          %401 = vmatprep.subr.mxu0 0.0
          %402 = vmatpush1.msra.mxu0 0.0
          %403 = vmatprep.subr.mxu0 0.0
          %404 = vmatpush1.msra.mxu0 0.0
          %405 = vmatprep.subr.mxu0 0.0
          %406 = vmatpush1.msra.mxu0 0.0
          %407 = vmatprep.subr.mxu0 0.0
          %408 = vmatpush1.msra.mxu0 0.0
          %409 = vmatprep.subr.mxu0 0.0
          %410 = vmatpush1.msra.mxu0 0.0
          %411 = vmatprep.subr.mxu0 0.0
          %412 = vmatpush1.msra.mxu0 0.0
          %413 = vmatprep.subr.mxu0 0.0
          %414 = vmatpush1.msra.mxu0 0.0
          %415 = vmatprep.subr.mxu0 0.0
          %416 = vmatpush1.msra.mxu0 0.0
          %417 = vmatprep.subr.mxu0 0.0
          %418 = vmatpush1.msra.mxu0 0.0
          %419 = vmatprep.subr.mxu0 0.0
          %420 = vmatpush1.msra.mxu0 0.0
          %421 = vmatprep.subr.mxu0 0.0
          %422 = vmatpush1.msra.mxu0 0.0
          %423 = vmatprep.subr.mxu0 0.0
          %424 = vmatpush1.msra.mxu0 0.0
          %425 = vmatprep.subr.mxu0 0.0
          %426 = vmatpush1.msra.mxu0 0.0
          %427 = vmatprep.mubr.f32.mxu0 0.0
          %428 = vmatmul.mubr.f32.gmra.mrb[0].mxu0 %v358
          %v429 = vpop.f32.mrb[0].mxu0
          %v430 = vadd.f32 %v299, %v429
          %v431 = vpop.f32.mrb[0].mxu0
          %432 = vdwg.mxu0
          %433 = vst [vmem:[#allocation8] sm:$0xff] %v430
        $region48: #{tpu_custom_call.1} parent=31 // pred_fallthru
          _
        // Predicated region
        $region49: #{tpu_custom_call.1} parent=31 // pred_check
          %p434 = pneg %p119
        $region50: #{tpu_custom_call.1} parent=31 // pred_check_branch
          %436 = sbr.rel (%p434) target = $region52
        $region51: #{tpu_custom_call.1} parent=31 // pred_region
          %s438 = ssub.s32 128, 128
          %439 = vsyncadd [#allocation5], %s438
          %s440 = smul.addr %s23, 128
          %s441 = scalar_lea.hbm %s3, %s440
          %s443 = sshll.u32 [#allocation8], 4
          %s444 = int_to_ptr.vmem [resolvable:$true] %s443
          %446 = dma.vmem_to_hbm [thread:$0]  %s444, 128, %s441, [#allocation5]
        $region52: #{tpu_custom_call.1} parent=31 // pred_fallthru
          _
        // Predicated region
        $region53: #{tpu_custom_call.1} parent=31 // pred_check
          %p447 = pneg %p119
        $region54: #{tpu_custom_call.1} parent=31 // pred_check_branch
          %449 = sbr.rel (%p447) target = $region56
        $region55: #{tpu_custom_call.1} parent=31 // pred_region
          %450 = dma.done [#allocation5], 128
        $region56: #{tpu_custom_call.1} parent=31 // pred_fallthru
          _
      $region32: #{tpu_custom_call.1} parent=5 // pred_fallthru
        _
      %p451 = scmp.le.s32.totalorder 2, %s14
      // Predicated region
      $region57: #{tpu_custom_call.1} parent=5 // pred_check
        %p452 = pneg %p451
      $region58: #{tpu_custom_call.1} parent=5 // pred_check_branch
        %454 = sbr.rel (%p452) target = $region60
      $region59: #{tpu_custom_call.1} parent=5 // pred_region
        %s455 = ssub.s32 %s14, 2
      $region60: #{tpu_custom_call.1} parent=5 // pred_fallthru
        _
    $region6: #{tpu_custom_call.1} parent=1 // loop_footer
      %s18 = sadd.s32 1, %s14
    $region7: #{tpu_custom_call.1} parent=1 // loop_footer_branch
      %13 = sbr.rel target = $region3
    $region8: #{tpu_custom_call.1} parent=1 // loop_exit
      _
    %456 = vsyncpa [#allocation4], 1
    %s457 = scalar_lea.sflag [#allocation4], 1
    %458 = vsyncpa %s457, 1
    %459 = vsyncpa [#allocation7], 1
    %460 = vsyncpa [#allocation5], 1
    %s461 = scalar_lea.sflag [#allocation5], 1
    %462 = vsyncpa %s461, 1

</llo_original>
